<compile_context>
chip_gen: v7x
topology: tpu7x:2x2x1
jax: 0.10.0
libtpu: 0.0.40
codegen_flags: <defaults>
</compile_context>

<pallas_src>
import functools

import jax
import jax.numpy as jnp
import numpy as np
from jax.experimental import pallas as pl
from jax.experimental.pallas import tpu as pltpu

N_ATOMS = 64      # matches `n_atoms = 64` in the PyTorch module
EPS = 1e-8


def _round_up(x: int, m: int) -> int:
    return (x + m - 1) // m * m


def _irfft_basis(n_samples: int):
    """DFT basis so irfft(spec) == Re(spec) @ C + Im(spec) @ S ('backward' norm)."""
    n_coeffs = n_samples // 2 + 1
    k = np.arange(n_coeffs, dtype=np.float64)[:, None]
    t = np.arange(n_samples, dtype=np.float64)[None, :]
    ang = 2.0 * np.pi * k * t / n_samples
    w = np.full((n_coeffs, 1), 2.0)
    w[0, 0] = 1.0
    if n_samples % 2 == 0:
        w[-1, 0] = 1.0                       # Nyquist bin appears once
    cos_b = (w * np.cos(ang) / n_samples).astype(np.float32)
    sin_b = (-w * np.sin(ang) / n_samples).astype(np.float32)
    return jnp.asarray(cos_b), jnp.asarray(sin_b)


def _bandpass_kernel(mean_ref, std_ref, nre_ref, nim_ref, cos_ref, sin_ref,
                     out_ref, *, n_coeffs):
    # mean_ref/std_ref: (tile_r, 1)
    # nre_ref/nim_ref : (tile_r, n_coeffs)   real/imag rfft of the fixed noise
    # cos_ref/sin_ref : (n_coeffs, n_samples) irfft basis
    # out_ref         : (tile_r, n_samples)
    mu = mean_ref[...]
    sg = std_ref[...]

    k = jax.lax.broadcasted_iota(jnp.int32, (1, n_coeffs), 1).astype(jnp.float32)
    freqs = k * (1.0 / (n_coeffs - 1))                     # linspace(0, 1, n_coeffs)

    z = (freqs - mu) / (sg + EPS)                          # (tile_r, n_coeffs)
    filt = jnp.exp(-0.5 * z * z)                           # EUP
    filt = filt / (jnp.max(filt, axis=-1, keepdims=True) + EPS)   # unit-peak (XLU)

    re = filt * nre_ref[...]
    im = filt * nim_ref[...]

    acc = jnp.dot(re, cos_ref[...], preferred_element_type=jnp.float32)
    acc = acc + jnp.dot(im, sin_ref[...], preferred_element_type=jnp.float32)
    out_ref[...] = acc.astype(out_ref.dtype)


def band_pass_filtered_noise(means, stds, noise, *, tile_r=256):
    """Pallas-backed BandPassFilteredNoise.forward given the drawn noise.

    means, stds: (batch, n_events);  noise: (1, n_atoms, n_samples), n_events == n_atoms.
    Returns (batch, n_events, n_samples).
    """
    batch, n_events = means.shape
    assert means.shape == stds.shape
    _, n_atoms, n_samples = noise.shape
    assert n_events == n_atoms, "module broadcasts (1, n_atoms, T) noise against (batch, n_events, T)"
    n_coeffs = n_samples // 2 + 1
    R = batch * n_events

    # Fixed-noise spectrum: computed once outside the kernel (no FFT in Pallas).
    spec = jnp.fft.rfft(noise[0].astype(jnp.float32), axis=-1)        # (n_atoms, n_coeffs)
    nre = jnp.tile(jnp.real(spec).astype(jnp.float32), (batch, 1))    # (R, n_coeffs)
    nim = jnp.tile(jnp.imag(spec).astype(jnp.float32), (batch, 1))

    cos_b, sin_b = _irfft_basis(n_samples)

    mu = means.reshape(R, 1).astype(jnp.float32)
    sg = stds.reshape(R, 1).astype(jnp.float32)

    # Collapse the grid: a single step covers the whole slab whenever it fits.
    tile_r = max(8, min(_round_up(R, 8), _round_up(tile_r, 8)))
    r_pad = _round_up(R, tile_r)
    if r_pad != R:
        pad = r_pad - R
        mu = jnp.pad(mu, ((0, pad), (0, 0)))
        sg = jnp.pad(sg, ((0, pad), (0, 0)), constant_values=1.0)
        nre = jnp.pad(nre, ((0, pad), (0, 0)))
        nim = jnp.pad(nim, ((0, pad), (0, 0)))

    kernel = functools.partial(_bandpass_kernel, n_coeffs=n_coeffs)

    out = pl.pallas_call(
        kernel,
        out_shape=jax.ShapeDtypeStruct((r_pad, n_samples), jnp.float32),
        grid_spec=pl.GridSpec(
            grid=(r_pad // tile_r,),
            in_specs=[
                pl.BlockSpec((tile_r, 1), lambda i: (i, 0)),            # means
                pl.BlockSpec((tile_r, 1), lambda i: (i, 0)),            # stds
                pl.BlockSpec((tile_r, n_coeffs), lambda i: (i, 0)),     # Re(noise spec)
                pl.BlockSpec((tile_r, n_coeffs), lambda i: (i, 0)),     # Im(noise spec)
                pl.BlockSpec((n_coeffs, n_samples), lambda i: (0, 0)),  # irfft cos basis
                pl.BlockSpec((n_coeffs, n_samples), lambda i: (0, 0)),  # irfft sin basis
            ],
            out_specs=pl.BlockSpec((tile_r, n_samples), lambda i: (i, 0)),
        ),
        compiler_params=pltpu.CompilerParams(
            dimension_semantics=("parallel",)),
    )(mu, sg, nre, nim, cos_b, sin_b)

    return out[:R].reshape(batch, n_events, n_samples)


def _ref_band_pass(means, stds, noise):
    """Pure-JAX reference mirroring the PyTorch forward (rfft -> gaussian filter -> irfft)."""
    n_samples = noise.shape[-1]
    spec = jnp.fft.rfft(noise.astype(jnp.float32), axis=-1)           # (1, n_atoms, n_coeffs)
    n_coeffs = spec.shape[-1]
    freqs = jnp.linspace(0.0, 1.0, n_coeffs)[None, None, :]
    filt = jnp.exp(-0.5 * ((freqs - means[..., None]) / (stds[..., None] + EPS)) ** 2)
    filt = filt / (jnp.max(filt, axis=-1, keepdims=True) + EPS)
    filtered = spec * filt
    return jnp.fft.irfft(filtered, n=n_samples, axis=-1)


if __name__ == "__main__":
    key = jax.random.PRNGKey(0)
    k_mean, k_std, k_noise = jax.random.split(key, 3)

    batch, n_events, n_samples = 2, N_ATOMS, 256
    means = jax.random.uniform(k_mean, (batch, n_events),
                               minval=0.01, maxval=0.99, dtype=jnp.float32)
    stds = jax.random.uniform(k_std, (batch, n_events),
                              minval=0.01, maxval=0.2, dtype=jnp.float32)
    # torch: torch.zeros(1, n_atoms, n_samples).uniform_(-1, 1)
    noise = jax.random.uniform(k_noise, (1, N_ATOMS, n_samples),
                               minval=-1.0, maxval=1.0, dtype=jnp.float32)

    out = band_pass_filtered_noise(means, stds, noise)
    out = jax.block_until_ready(out)
    assert out.shape == (batch, n_events, n_samples)

    ref = _ref_band_pass(means, stds, noise)
    np.testing.assert_allclose(np.asarray(out), np.asarray(ref),
                               rtol=1e-4, atol=1e-4)
    print("KERNEL_OK")
</pallas_src>

<mosaic_0001>
module attributes {stable_mosaic.version = 11 : i64} {
  func.func @_bandpass_kernel(%arg0: i32, %arg1: memref<128x1xf32, #tpu.memory_space<vmem>>, %arg2: memref<128x1xf32, #tpu.memory_space<vmem>>, %arg3: memref<128x129xf32, #tpu.memory_space<vmem>>, %arg4: memref<128x129xf32, #tpu.memory_space<vmem>>, %arg5: memref<129x256xf32, #tpu.memory_space<vmem>>, %arg6: memref<129x256xf32, #tpu.memory_space<vmem>>, %arg7: memref<128x256xf32, #tpu.memory_space<vmem>>) attributes {dimension_semantics = [#tpu.dimension_semantics<parallel>], iteration_bounds = array<i64: 1>, scalar_prefetch = 0 : i64, scratch_operands = 0 : i64, tpu.core_type = #tpu.core_type<tc>, window_params = [{transform_indices = @transform_0, window_bounds = array<i64: 128, 1>}, {transform_indices = @transform_1, window_bounds = array<i64: 128, 1>}, {transform_indices = @transform_2, window_bounds = array<i64: 128, 129>}, {transform_indices = @transform_3, window_bounds = array<i64: 128, 129>}, {pipeline_mode = #tpu.pipeline_mode<synchronous>, transform_indices = @transform_4, window_bounds = array<i64: 129, 256>}, {pipeline_mode = #tpu.pipeline_mode<synchronous>, transform_indices = @transform_5, window_bounds = array<i64: 129, 256>}, {transform_indices = @transform_6, window_bounds = array<i64: 128, 256>}]} {
    %c0 = arith.constant 0 : index
    %c0_0 = arith.constant 0 : index
    %0 = vector.load %arg1[%c0, %c0_0] : memref<128x1xf32, #tpu.memory_space<vmem>>, vector<128x1xf32>
    %c0_1 = arith.constant 0 : index
    %c0_2 = arith.constant 0 : index
    %1 = vector.load %arg2[%c0_1, %c0_2] : memref<128x1xf32, #tpu.memory_space<vmem>>, vector<128x1xf32>
    %2 = tpu.iota {dimensions = array<i32: 1>} : vector<1x129xi32>
    %3 = arith.sitofp %2 : vector<1x129xi32> to vector<1x129xf32>
    %cst = arith.constant 7.812500e-03 : f32
    %4 = vector.broadcast %cst : f32 to vector<1x129xf32>
    %5 = arith.mulf %3, %4 : vector<1x129xf32>
    %6 = vector.broadcast %5 : vector<1x129xf32> to vector<128x129xf32>
    %7 = vector.broadcast %0 : vector<128x1xf32> to vector<128x129xf32>
    %8 = arith.subf %6, %7 : vector<128x129xf32>
    %cst_3 = arith.constant 9.99999993E-9 : f32
    %9 = vector.broadcast %cst_3 : f32 to vector<128x1xf32>
    %10 = arith.addf %1, %9 : vector<128x1xf32>
    %11 = vector.broadcast %10 : vector<128x1xf32> to vector<128x129xf32>
    %12 = arith.divf %8, %11 : vector<128x129xf32>
    %cst_4 = arith.constant -5.000000e-01 : f32
    %13 = vector.broadcast %cst_4 : f32 to vector<128x129xf32>
    %14 = arith.mulf %13, %12 : vector<128x129xf32>
    %15 = arith.mulf %14, %12 : vector<128x129xf32>
    %16 = math.exp %15 : vector<128x129xf32>
    %cst_5 = arith.constant dense<0xFF800000> : vector<128xf32>
    %17 = vector.multi_reduction <maximumf>, %16, %cst_5 [1] : vector<128x129xf32> to vector<128xf32>
    %18 = vector.shape_cast %17 : vector<128xf32> to vector<128x1xf32>
    %cst_6 = arith.constant 9.99999993E-9 : f32
    %19 = vector.broadcast %cst_6 : f32 to vector<128x1xf32>
    %20 = arith.addf %18, %19 : vector<128x1xf32>
    %21 = vector.broadcast %20 : vector<128x1xf32> to vector<128x129xf32>
    %22 = arith.divf %16, %21 : vector<128x129xf32>
    %c0_7 = arith.constant 0 : index
    %c0_8 = arith.constant 0 : index
    %23 = vector.load %arg3[%c0_7, %c0_8] : memref<128x129xf32, #tpu.memory_space<vmem>>, vector<128x129xf32>
    %24 = arith.mulf %22, %23 : vector<128x129xf32>
    %c0_9 = arith.constant 0 : index
    %c0_10 = arith.constant 0 : index
    %25 = vector.load %arg4[%c0_9, %c0_10] : memref<128x129xf32, #tpu.memory_space<vmem>>, vector<128x129xf32>
    %26 = arith.mulf %22, %25 : vector<128x129xf32>
    %c0_11 = arith.constant 0 : index
    %c0_12 = arith.constant 0 : index
    %27 = vector.load %arg5[%c0_11, %c0_12] : memref<129x256xf32, #tpu.memory_space<vmem>>, vector<129x256xf32>
    %cst_13 = arith.constant dense<0.000000e+00> : vector<128x256xf32>
    %28 = tpu.matmul %24, %27, %cst_13 {dimension_numbers = #tpu.dot_dimension_numbers<[1], [0], [0], [1], [0, 0, 1, 1], [], []>} : vector<128x129xf32>, vector<129x256xf32>, vector<128x256xf32> -> vector<128x256xf32>
    %c0_14 = arith.constant 0 : index
    %c0_15 = arith.constant 0 : index
    %29 = vector.load %arg6[%c0_14, %c0_15] : memref<129x256xf32, #tpu.memory_space<vmem>>, vector<129x256xf32>
    %cst_16 = arith.constant dense<0.000000e+00> : vector<128x256xf32>
    %30 = tpu.matmul %26, %29, %cst_16 {dimension_numbers = #tpu.dot_dimension_numbers<[1], [0], [0], [1], [0, 0, 1, 1], [], []>} : vector<128x129xf32>, vector<129x256xf32>, vector<128x256xf32> -> vector<128x256xf32>
    %31 = arith.addf %28, %30 : vector<128x256xf32>
    %c0_17 = arith.constant 0 : index
    %c0_18 = arith.constant 0 : index
    %32 = vector.load %arg7[%c0_17, %c0_18] : memref<128x256xf32, #tpu.memory_space<vmem>>, vector<128x256xf32>
    tpu.vector_store %arg7[%c0_17, %c0_18], %31 {strides = array<i32>} : memref<128x256xf32, #tpu.memory_space<vmem>>, vector<128x256xf32>,
    return
  }
  func.func @transform_0(%arg0: i32) -> (i32, i32) {
    %c0_i32 = arith.constant 0 : i32
    %c0_i32_0 = arith.constant 0 : i32
    return %arg0, %c0_i32 : i32, i32
  }
  func.func @transform_1(%arg0: i32) -> (i32, i32) {
    %c0_i32 = arith.constant 0 : i32
    %c0_i32_0 = arith.constant 0 : i32
    return %arg0, %c0_i32 : i32, i32
  }
  func.func @transform_2(%arg0: i32) -> (i32, i32) {
    %c0_i32 = arith.constant 0 : i32
    %c0_i32_0 = arith.constant 0 : i32
    return %arg0, %c0_i32 : i32, i32
  }
  func.func @transform_3(%arg0: i32) -> (i32, i32) {
    %c0_i32 = arith.constant 0 : i32
    %c0_i32_0 = arith.constant 0 : i32
    return %arg0, %c0_i32 : i32, i32
  }
  func.func @transform_4(%arg0: i32) -> (i32, i32) {
    %c0_i32 = arith.constant 0 : i32
    %c0_i32_0 = arith.constant 0 : i32
    %c0_i32_1 = arith.constant 0 : i32
    return %c0_i32, %c0_i32_0 : i32, i32
  }
  func.func @transform_5(%arg0: i32) -> (i32, i32) {
    %c0_i32 = arith.constant 0 : i32
    %c0_i32_0 = arith.constant 0 : i32
    %c0_i32_1 = arith.constant 0 : i32
    return %c0_i32, %c0_i32_0 : i32, i32
  }
  func.func @transform_6(%arg0: i32) -> (i32, i32) {
    %c0_i32 = arith.constant 0 : i32
    %c0_i32_0 = arith.constant 0 : i32
    return %arg0, %c0_i32 : i32, i32
  }
}

</mosaic_0001>

<llo_original>
// kernel: tpu_custom_call.1
$region0: #{tpu_custom_call.1}
  #allocation0 [shape = 'u32[]', space=smem, size = 0x4, offset = 0x4, fixed_abs, tag = 'smem constant byte address 0x4 - core index']
  #allocation1 [shape = 'u32[144,128]{1,0:T(1,128)}', space=vmem, size = 0x12000, scoped, tag = 'internal scratch']
  %s0 = inlined_call_operand.vmem [shape: f32[128,1], index: 0, kind: input, shape index: {}]
  %s1 = inlined_call_operand.vmem [shape: f32[128,1], index: 1, kind: input, shape index: {}]
  %s2 = inlined_call_operand.vmem [shape: f32[128,129], index: 2, kind: input, shape index: {}]
  %s3 = inlined_call_operand.vmem [shape: f32[128,129], index: 3, kind: input, shape index: {}]
  %s4 = inlined_call_operand.vmem [shape: f32[129,256], index: 4, kind: input, shape index: {}]
  %s5 = inlined_call_operand.vmem [shape: f32[129,256], index: 5, kind: input, shape index: {}]
  %s6 = inlined_call_operand.hbm [shape: f32[128,256], index: 6, kind: output, shape index: {}]
  %s7 = sld [smem:[#allocation0]]
  $region34: #{tpu_custom_call.1} parent=0
    _
  %s9 = ssub.s32 1, %s7
  %s10 = scalar_select 0, %s9, %s7
  $region1: #{tpu_custom_call.1} parent=0
    #allocation2 [shape = 'u8[131072]{0}', space=vmem, size = 0x20000, scoped, tag = 'output window, operand 0, single buffered']
    #allocation3 [shape = 's32[1]{0}', space=sflag, size = 0x4, scoped, tag = 'scoped memory for tpu_custom_call.1']
    %11 = vsyncpa [#allocation3], 0
    // Predicated region
    $region2: #{tpu_custom_call.1} parent=1 // pred_check
      _
    $region3: #{tpu_custom_call.1} parent=1 // pred_check_branch
      %13 = sbr.rel (0) target = $region5
    $region4: #{tpu_custom_call.1} parent=1 // pred_region
      _
    $region5: #{tpu_custom_call.1} parent=1 // pred_fallthru
      _
    // Predicated region
    $region6: #{tpu_custom_call.1} parent=1 // pred_check
      _
    $region7: #{tpu_custom_call.1} parent=1 // pred_check_branch
      %15 = sbr.rel (0) target = $region9
    $region8: #{tpu_custom_call.1} parent=1 // pred_region
      _
    $region9: #{tpu_custom_call.1} parent=1 // pred_fallthru
      _
    // Predicated region
    $region10: #{tpu_custom_call.1} parent=1 // pred_check
      _
    $region11: #{tpu_custom_call.1} parent=1 // pred_check_branch
      %17 = sbr.rel (0) target = $region13
    $region12: #{tpu_custom_call.1} parent=1 // pred_region
      _
    $region13: #{tpu_custom_call.1} parent=1 // pred_fallthru
      _
    // Predicated region
    $region14: #{tpu_custom_call.1} parent=1 // pred_check
      _
    $region15: #{tpu_custom_call.1} parent=1 // pred_check_branch
      %19 = sbr.rel (0) target = $region17
    $region16: #{tpu_custom_call.1} parent=1 // pred_region
      _
    $region17: #{tpu_custom_call.1} parent=1 // pred_fallthru
      _
    // Predicated region
    $region18: #{tpu_custom_call.1} parent=1 // pred_check
      _
    $region19: #{tpu_custom_call.1} parent=1 // pred_check_branch
      %21 = sbr.rel (0) target = $region21
    $region20: #{tpu_custom_call.1} parent=1 // pred_region
      _
    $region21: #{tpu_custom_call.1} parent=1 // pred_fallthru
      _
    // Predicated region
    $region22: #{tpu_custom_call.1} parent=1 // pred_check
      _
    $region23: #{tpu_custom_call.1} parent=1 // pred_check_branch
      %23 = sbr.rel (0) target = $region25
    $region24: #{tpu_custom_call.1} parent=1 // pred_region
      _
    $region25: #{tpu_custom_call.1} parent=1 // pred_fallthru
      _
    %v24 = vld [vmem:[%s0] sm:$0xff]
    %v25 = vld [vmem:[%s0 + $0x8] sm:$0xff]
    %v26 = vld [vmem:[%s0 + $0x10] sm:$0xff]
    %v27 = vld [vmem:[%s0 + $0x18] sm:$0xff]
    %v28 = vld [vmem:[%s0 + $0x20] sm:$0xff]
    %v29 = vld [vmem:[%s0 + $0x28] sm:$0xff]
    %v30 = vld [vmem:[%s0 + $0x30] sm:$0xff]
    %v31 = vld [vmem:[%s0 + $0x38] sm:$0xff]
    %v32 = vld [vmem:[%s0 + $0x40] sm:$0xff]
    %v33 = vld [vmem:[%s0 + $0x48] sm:$0xff]
    %v34 = vld [vmem:[%s0 + $0x50] sm:$0xff]
    %v35 = vld [vmem:[%s0 + $0x58] sm:$0xff]
    %v36 = vld [vmem:[%s0 + $0x60] sm:$0xff]
    %v37 = vld [vmem:[%s0 + $0x68] sm:$0xff]
    %v38 = vld [vmem:[%s0 + $0x70] sm:$0xff]
    %v39 = vld [vmem:[%s0 + $0x78] sm:$0xff]
    %v40 = vld [vmem:[%s1] sm:$0xff]
    %v41 = vld [vmem:[%s1 + $0x8] sm:$0xff]
    %v42 = vld [vmem:[%s1 + $0x10] sm:$0xff]
    %v43 = vld [vmem:[%s1 + $0x18] sm:$0xff]
    %v44 = vld [vmem:[%s1 + $0x20] sm:$0xff]
    %v45 = vld [vmem:[%s1 + $0x28] sm:$0xff]
    %v46 = vld [vmem:[%s1 + $0x30] sm:$0xff]
    %v47 = vld [vmem:[%s1 + $0x38] sm:$0xff]
    %v48 = vld [vmem:[%s1 + $0x40] sm:$0xff]
    %v49 = vld [vmem:[%s1 + $0x48] sm:$0xff]
    %v50 = vld [vmem:[%s1 + $0x50] sm:$0xff]
    %v51 = vld [vmem:[%s1 + $0x58] sm:$0xff]
    %v52 = vld [vmem:[%s1 + $0x60] sm:$0xff]
    %v53 = vld [vmem:[%s1 + $0x68] sm:$0xff]
    %v54 = vld [vmem:[%s1 + $0x70] sm:$0xff]
    %v55 = vld [vmem:[%s1 + $0x78] sm:$0xff]
    %v56 = vlaneseq
    %v57 = vand.u32 %v56, 127
    %v58 = vadd.s32 %v57, 128
    %v59 = vcvt.s32.f32 %v57
    %v60 = vcvt.s32.f32 %v58
    %v61 = vmul.f32 %v59, 0.0078125
    %v62 = vmul.f32 %v60, 0.0078125
    %64 = vset.pattern.permute.xlu0 0
    %65 = vperm.xlu0 %64, %v24
    %v66 = vpop.permute.xlu0 %65
    %69 = vset.pattern.permute.xlu0 0
    %70 = vperm.xlu0 %69, %v25
    %v71 = vpop.permute.xlu0 %70
    %74 = vset.pattern.permute.xlu0 0
    %75 = vperm.xlu0 %74, %v26
    %v76 = vpop.permute.xlu0 %75
    %79 = vset.pattern.permute.xlu0 0
    %80 = vperm.xlu0 %79, %v27
    %v81 = vpop.permute.xlu0 %80
    %84 = vset.pattern.permute.xlu0 0
    %85 = vperm.xlu0 %84, %v28
    %v86 = vpop.permute.xlu0 %85
    %89 = vset.pattern.permute.xlu0 0
    %90 = vperm.xlu0 %89, %v29
    %v91 = vpop.permute.xlu0 %90
    %94 = vset.pattern.permute.xlu0 0
    %95 = vperm.xlu0 %94, %v30
    %v96 = vpop.permute.xlu0 %95
    %99 = vset.pattern.permute.xlu0 0
    %100 = vperm.xlu0 %99, %v31
    %v101 = vpop.permute.xlu0 %100
    %104 = vset.pattern.permute.xlu0 0
    %105 = vperm.xlu0 %104, %v32
    %v106 = vpop.permute.xlu0 %105
    %109 = vset.pattern.permute.xlu0 0
    %110 = vperm.xlu0 %109, %v33
    %v111 = vpop.permute.xlu0 %110
    %114 = vset.pattern.permute.xlu0 0
    %115 = vperm.xlu0 %114, %v34
    %v116 = vpop.permute.xlu0 %115
    %119 = vset.pattern.permute.xlu0 0
    %120 = vperm.xlu0 %119, %v35
    %v121 = vpop.permute.xlu0 %120
    %124 = vset.pattern.permute.xlu0 0
    %125 = vperm.xlu0 %124, %v36
    %v126 = vpop.permute.xlu0 %125
    %129 = vset.pattern.permute.xlu0 0
    %130 = vperm.xlu0 %129, %v37
    %v131 = vpop.permute.xlu0 %130
    %134 = vset.pattern.permute.xlu0 0
    %135 = vperm.xlu0 %134, %v38
    %v136 = vpop.permute.xlu0 %135
    %139 = vset.pattern.permute.xlu0 0
    %140 = vperm.xlu0 %139, %v39
    %v141 = vpop.permute.xlu0 %140
    %v143 = vsub.f32 %v61, %v66
    %v144 = vsub.f32 %v62, %v66
    %v145 = vsub.f32 %v61, %v71
    %v146 = vsub.f32 %v62, %v71
    %v147 = vsub.f32 %v61, %v76
    %v148 = vsub.f32 %v62, %v76
    %v149 = vsub.f32 %v61, %v81
    %v150 = vsub.f32 %v62, %v81
    %v151 = vsub.f32 %v61, %v86
    %v152 = vsub.f32 %v62, %v86
    %v153 = vsub.f32 %v61, %v91
    %v154 = vsub.f32 %v62, %v91
    %v155 = vsub.f32 %v61, %v96
    %v156 = vsub.f32 %v62, %v96
    %v157 = vsub.f32 %v61, %v101
    %v158 = vsub.f32 %v62, %v101
    %v159 = vsub.f32 %v61, %v106
    %v160 = vsub.f32 %v62, %v106
    %v161 = vsub.f32 %v61, %v111
    %v162 = vsub.f32 %v62, %v111
    %v163 = vsub.f32 %v61, %v116
    %v164 = vsub.f32 %v62, %v116
    %v165 = vsub.f32 %v61, %v121
    %v166 = vsub.f32 %v62, %v121
    %v167 = vsub.f32 %v61, %v126
    %v168 = vsub.f32 %v62, %v126
    %v169 = vsub.f32 %v61, %v131
    %v170 = vsub.f32 %v62, %v131
    %v171 = vsub.f32 %v61, %v136
    %v172 = vsub.f32 %v62, %v136
    %v173 = vsub.f32 %v61, %v141
    %v174 = vsub.f32 %v62, %v141
    %v175 = vadd.f32 %v40, 1e-08
    %v176 = vadd.f32 %v41, 1e-08
    %v177 = vadd.f32 %v42, 1e-08
    %v178 = vadd.f32 %v43, 1e-08
    %v179 = vadd.f32 %v44, 1e-08
    %v180 = vadd.f32 %v45, 1e-08
    %v181 = vadd.f32 %v46, 1e-08
    %v182 = vadd.f32 %v47, 1e-08
    %v183 = vadd.f32 %v48, 1e-08
    %v184 = vadd.f32 %v49, 1e-08
    %v185 = vadd.f32 %v50, 1e-08
    %v186 = vadd.f32 %v51, 1e-08
    %v187 = vadd.f32 %v52, 1e-08
    %v188 = vadd.f32 %v53, 1e-08
    %v189 = vadd.f32 %v54, 1e-08
    %v190 = vadd.f32 %v55, 1e-08
    %192 = vset.pattern.permute.xlu0 0
    %193 = vperm.xlu0 %192, %v175
    %v194 = vpop.permute.xlu0 %193
    %197 = vset.pattern.permute.xlu0 0
    %198 = vperm.xlu0 %197, %v176
    %v199 = vpop.permute.xlu0 %198
    %202 = vset.pattern.permute.xlu0 0
    %203 = vperm.xlu0 %202, %v177
    %v204 = vpop.permute.xlu0 %203
    %207 = vset.pattern.permute.xlu0 0
    %208 = vperm.xlu0 %207, %v178
    %v209 = vpop.permute.xlu0 %208
    %212 = vset.pattern.permute.xlu0 0
    %213 = vperm.xlu0 %212, %v179
    %v214 = vpop.permute.xlu0 %213
    %217 = vset.pattern.permute.xlu0 0
    %218 = vperm.xlu0 %217, %v180
    %v219 = vpop.permute.xlu0 %218
    %222 = vset.pattern.permute.xlu0 0
    %223 = vperm.xlu0 %222, %v181
    %v224 = vpop.permute.xlu0 %223
    %227 = vset.pattern.permute.xlu0 0
    %228 = vperm.xlu0 %227, %v182
    %v229 = vpop.permute.xlu0 %228
    %232 = vset.pattern.permute.xlu0 0
    %233 = vperm.xlu0 %232, %v183
    %v234 = vpop.permute.xlu0 %233
    %237 = vset.pattern.permute.xlu0 0
    %238 = vperm.xlu0 %237, %v184
    %v239 = vpop.permute.xlu0 %238
    %242 = vset.pattern.permute.xlu0 0
    %243 = vperm.xlu0 %242, %v185
    %v244 = vpop.permute.xlu0 %243
    %247 = vset.pattern.permute.xlu0 0
    %248 = vperm.xlu0 %247, %v186
    %v249 = vpop.permute.xlu0 %248
    %252 = vset.pattern.permute.xlu0 0
    %253 = vperm.xlu0 %252, %v187
    %v254 = vpop.permute.xlu0 %253
    %257 = vset.pattern.permute.xlu0 0
    %258 = vperm.xlu0 %257, %v188
    %v259 = vpop.permute.xlu0 %258
    %262 = vset.pattern.permute.xlu0 0
    %263 = vperm.xlu0 %262, %v189
    %v264 = vpop.permute.xlu0 %263
    %267 = vset.pattern.permute.xlu0 0
    %268 = vperm.xlu0 %267, %v190
    %v269 = vpop.permute.xlu0 %268
    %v271 = vrcp.pop %v194
    %v272 = vmul.f32 %v143, %v271
    %v273 = vmul.f32 %v144, %v271
    %v274 = vrcp.pop %v199
    %v275 = vmul.f32 %v145, %v274
    %v276 = vmul.f32 %v146, %v274
    %v277 = vrcp.pop %v204
    %v278 = vmul.f32 %v147, %v277
    %v279 = vmul.f32 %v148, %v277
    %v280 = vrcp.pop %v209
    %v281 = vmul.f32 %v149, %v280
    %v282 = vmul.f32 %v150, %v280
    %v283 = vrcp.pop %v214
    %v284 = vmul.f32 %v151, %v283
    %v285 = vmul.f32 %v152, %v283
    %v286 = vrcp.pop %v219
    %v287 = vmul.f32 %v153, %v286
    %v288 = vmul.f32 %v154, %v286
    %v289 = vrcp.pop %v224
    %v290 = vmul.f32 %v155, %v289
    %v291 = vmul.f32 %v156, %v289
    %v292 = vrcp.pop %v229
    %v293 = vmul.f32 %v157, %v292
    %v294 = vmul.f32 %v158, %v292
    %v295 = vrcp.pop %v234
    %v296 = vmul.f32 %v159, %v295
    %v297 = vmul.f32 %v160, %v295
    %v298 = vrcp.pop %v239
    %v299 = vmul.f32 %v161, %v298
    %v300 = vmul.f32 %v162, %v298
    %v301 = vrcp.pop %v244
    %v302 = vmul.f32 %v163, %v301
    %v303 = vmul.f32 %v164, %v301
    %v304 = vrcp.pop %v249
    %v305 = vmul.f32 %v165, %v304
    %v306 = vmul.f32 %v166, %v304
    %v307 = vrcp.pop %v254
    %v308 = vmul.f32 %v167, %v307
    %v309 = vmul.f32 %v168, %v307
    %v310 = vrcp.pop %v259
    %v311 = vmul.f32 %v169, %v310
    %v312 = vmul.f32 %v170, %v310
    %v313 = vrcp.pop %v264
    %v314 = vmul.f32 %v171, %v313
    %v315 = vmul.f32 %v172, %v313
    %v316 = vrcp.pop %v269
    %v317 = vmul.f32 %v173, %v316
    %v318 = vmul.f32 %v174, %v316
    %v319 = vmul.f32 %v272, -0.5
    %v320 = vmul.f32 %v273, -0.5
    %v321 = vmul.f32 %v275, -0.5
    %v322 = vmul.f32 %v276, -0.5
    %v323 = vmul.f32 %v278, -0.5
    %v324 = vmul.f32 %v279, -0.5
    %v325 = vmul.f32 %v281, -0.5
    %v326 = vmul.f32 %v282, -0.5
    %v327 = vmul.f32 %v284, -0.5
    %v328 = vmul.f32 %v285, -0.5
    %v329 = vmul.f32 %v287, -0.5
    %v330 = vmul.f32 %v288, -0.5
    %v331 = vmul.f32 %v290, -0.5
    %v332 = vmul.f32 %v291, -0.5
    %v333 = vmul.f32 %v293, -0.5
    %v334 = vmul.f32 %v294, -0.5
    %v335 = vmul.f32 %v296, -0.5
    %v336 = vmul.f32 %v297, -0.5
    %v337 = vmul.f32 %v299, -0.5
    %v338 = vmul.f32 %v300, -0.5
    %v339 = vmul.f32 %v302, -0.5
    %v340 = vmul.f32 %v303, -0.5
    %v341 = vmul.f32 %v305, -0.5
    %v342 = vmul.f32 %v306, -0.5
    %v343 = vmul.f32 %v308, -0.5
    %v344 = vmul.f32 %v309, -0.5
    %v345 = vmul.f32 %v311, -0.5
    %v346 = vmul.f32 %v312, -0.5
    %v347 = vmul.f32 %v314, -0.5
    %v348 = vmul.f32 %v315, -0.5
    %v349 = vmul.f32 %v317, -0.5
    %v350 = vmul.f32 %v318, -0.5
    %v351 = vmul.f32 %v319, %v272
    %v352 = vmul.f32 %v320, %v273
    %v353 = vmul.f32 %v321, %v275
    %v354 = vmul.f32 %v322, %v276
    %v355 = vmul.f32 %v323, %v278
    %v356 = vmul.f32 %v324, %v279
    %v357 = vmul.f32 %v325, %v281
    %v358 = vmul.f32 %v326, %v282
    %v359 = vmul.f32 %v327, %v284
    %v360 = vmul.f32 %v328, %v285
    %v361 = vmul.f32 %v329, %v287
    %v362 = vmul.f32 %v330, %v288
    %v363 = vmul.f32 %v331, %v290
    %v364 = vmul.f32 %v332, %v291
    %v365 = vmul.f32 %v333, %v293
    %v366 = vmul.f32 %v334, %v294
    %v367 = vmul.f32 %v335, %v296
    %v368 = vmul.f32 %v336, %v297
    %v369 = vmul.f32 %v337, %v299
    %v370 = vmul.f32 %v338, %v300
    %v371 = vmul.f32 %v339, %v302
    %v372 = vmul.f32 %v340, %v303
    %v373 = vmul.f32 %v341, %v305
    %v374 = vmul.f32 %v342, %v306
    %v375 = vmul.f32 %v343, %v308
    %v376 = vmul.f32 %v344, %v309
    %v377 = vmul.f32 %v345, %v311
    %v378 = vmul.f32 %v346, %v312
    %v379 = vmul.f32 %v347, %v314
    %v380 = vmul.f32 %v348, %v315
    %v381 = vmul.f32 %v349, %v317
    %v382 = vmul.f32 %v350, %v318
    %v383 = vmul.f32 %v351, 1.442695
    %v384 = vpow.pop %v383
    %v385 = vmul.f32 %v352, 1.442695
    %v386 = vpow.pop %v385
    %v387 = vmul.f32 %v353, 1.442695
    %v388 = vpow.pop %v387
    %v389 = vmul.f32 %v354, 1.442695
    %v390 = vpow.pop %v389
    %v391 = vmul.f32 %v355, 1.442695
    %v392 = vpow.pop %v391
    %v393 = vmul.f32 %v356, 1.442695
    %v394 = vpow.pop %v393
    %v395 = vmul.f32 %v357, 1.442695
    %v396 = vpow.pop %v395
    %v397 = vmul.f32 %v358, 1.442695
    %v398 = vpow.pop %v397
    %v399 = vmul.f32 %v359, 1.442695
    %v400 = vpow.pop %v399
    %v401 = vmul.f32 %v360, 1.442695
    %v402 = vpow.pop %v401
    %v403 = vmul.f32 %v361, 1.442695
    %v404 = vpow.pop %v403
    %v405 = vmul.f32 %v362, 1.442695
    %v406 = vpow.pop %v405
    %v407 = vmul.f32 %v363, 1.442695
    %v408 = vpow.pop %v407
    %v409 = vmul.f32 %v364, 1.442695
    %v410 = vpow.pop %v409
    %v411 = vmul.f32 %v365, 1.442695
    %v412 = vpow.pop %v411
    %v413 = vmul.f32 %v366, 1.442695
    %v414 = vpow.pop %v413
    %v415 = vmul.f32 %v367, 1.442695
    %v416 = vpow.pop %v415
    %v417 = vmul.f32 %v368, 1.442695
    %v418 = vpow.pop %v417
    %v419 = vmul.f32 %v369, 1.442695
    %v420 = vpow.pop %v419
    %v421 = vmul.f32 %v370, 1.442695
    %v422 = vpow.pop %v421
    %v423 = vmul.f32 %v371, 1.442695
    %v424 = vpow.pop %v423
    %v425 = vmul.f32 %v372, 1.442695
    %v426 = vpow.pop %v425
    %v427 = vmul.f32 %v373, 1.442695
    %v428 = vpow.pop %v427
    %v429 = vmul.f32 %v374, 1.442695
    %v430 = vpow.pop %v429
    %v431 = vmul.f32 %v375, 1.442695
    %v432 = vpow.pop %v431
    %v433 = vmul.f32 %v376, 1.442695
    %v434 = vpow.pop %v433
    %v435 = vmul.f32 %v377, 1.442695
    %v436 = vpow.pop %v435
    %v437 = vmul.f32 %v378, 1.442695
    %v438 = vpow.pop %v437
    %v439 = vmul.f32 %v379, 1.442695
    %v440 = vpow.pop %v439
    %v441 = vmul.f32 %v380, 1.442695
    %v442 = vpow.pop %v441
    %v443 = vmul.f32 %v381, 1.442695
    %v444 = vpow.pop %v443
    %v445 = vmul.f32 %v382, 1.442695
    %v446 = vpow.pop %v445
    %vm447 = vcmask 7168
    %v448 = vsel %vm447, %v386, -inf
    %v449 = vmax.f32 %v384, %v448
    %450 = vmax.xlane.f32.xlu0 %v449
    %v451 = vpop.xlane.xlu0 %450
    %v452 = vsel %vm447, %v390, -inf
    %v453 = vmax.f32 %v388, %v452
    %454 = vmax.xlane.f32.xlu0 %v453
    %v455 = vpop.xlane.xlu0 %454
    %v456 = vsel %vm447, %v394, -inf
    %v457 = vmax.f32 %v392, %v456
    %458 = vmax.xlane.f32.xlu0 %v457
    %v459 = vpop.xlane.xlu0 %458
    %v460 = vsel %vm447, %v398, -inf
    %v461 = vmax.f32 %v396, %v460
    %462 = vmax.xlane.f32.xlu0 %v461
    %v463 = vpop.xlane.xlu0 %462
    %v464 = vsel %vm447, %v402, -inf
    %v465 = vmax.f32 %v400, %v464
    %466 = vmax.xlane.f32.xlu0 %v465
    %v467 = vpop.xlane.xlu0 %466
    %v468 = vsel %vm447, %v406, -inf
    %v469 = vmax.f32 %v404, %v468
    %470 = vmax.xlane.f32.xlu0 %v469
    %v471 = vpop.xlane.xlu0 %470
    %v472 = vsel %vm447, %v410, -inf
    %v473 = vmax.f32 %v408, %v472
    %474 = vmax.xlane.f32.xlu0 %v473
    %v475 = vpop.xlane.xlu0 %474
    %v476 = vsel %vm447, %v414, -inf
    %v477 = vmax.f32 %v412, %v476
    %478 = vmax.xlane.f32.xlu0 %v477
    %v479 = vpop.xlane.xlu0 %478
    %v480 = vsel %vm447, %v418, -inf
    %v481 = vmax.f32 %v416, %v480
    %482 = vmax.xlane.f32.xlu0 %v481
    %v483 = vpop.xlane.xlu0 %482
    %v484 = vsel %vm447, %v422, -inf
    %v485 = vmax.f32 %v420, %v484
    %486 = vmax.xlane.f32.xlu0 %v485
    %v487 = vpop.xlane.xlu0 %486
    %v488 = vsel %vm447, %v426, -inf
    %v489 = vmax.f32 %v424, %v488
    %490 = vmax.xlane.f32.xlu0 %v489
    %v491 = vpop.xlane.xlu0 %490
    %v492 = vsel %vm447, %v430, -inf
    %v493 = vmax.f32 %v428, %v492
    %494 = vmax.xlane.f32.xlu0 %v493
    %v495 = vpop.xlane.xlu0 %494
    %v496 = vsel %vm447, %v434, -inf
    %v497 = vmax.f32 %v432, %v496
    %498 = vmax.xlane.f32.xlu0 %v497
    %v499 = vpop.xlane.xlu0 %498
    %v500 = vsel %vm447, %v438, -inf
    %v501 = vmax.f32 %v436, %v500
    %502 = vmax.xlane.f32.xlu0 %v501
    %v503 = vpop.xlane.xlu0 %502
    %v504 = vsel %vm447, %v442, -inf
    %v505 = vmax.f32 %v440, %v504
    %506 = vmax.xlane.f32.xlu0 %v505
    %v507 = vpop.xlane.xlu0 %506
    %v508 = vsel %vm447, %v446, -inf
    %v509 = vmax.f32 %v444, %v508
    %510 = vmax.xlane.f32.xlu0 %v509
    %v511 = vpop.xlane.xlu0 %510
    %v512 = vadd.f32 %v451, 1e-08
    %v513 = vadd.f32 %v455, 1e-08
    %v514 = vadd.f32 %v459, 1e-08
    %v515 = vadd.f32 %v463, 1e-08
    %v516 = vadd.f32 %v467, 1e-08
    %v517 = vadd.f32 %v471, 1e-08
    %v518 = vadd.f32 %v475, 1e-08
    %v519 = vadd.f32 %v479, 1e-08
    %v520 = vadd.f32 %v483, 1e-08
    %v521 = vadd.f32 %v487, 1e-08
    %v522 = vadd.f32 %v491, 1e-08
    %v523 = vadd.f32 %v495, 1e-08
    %v524 = vadd.f32 %v499, 1e-08
    %v525 = vadd.f32 %v503, 1e-08
    %v526 = vadd.f32 %v507, 1e-08
    %v527 = vadd.f32 %v511, 1e-08
    %v528 = vrcp.pop %v512
    %v529 = vmul.f32 %v384, %v528
    %v530 = vmul.f32 %v386, %v528
    %v531 = vrcp.pop %v513
    %v532 = vmul.f32 %v388, %v531
    %v533 = vmul.f32 %v390, %v531
    %v534 = vrcp.pop %v514
    %v535 = vmul.f32 %v392, %v534
    %v536 = vmul.f32 %v394, %v534
    %v537 = vrcp.pop %v515
    %v538 = vmul.f32 %v396, %v537
    %v539 = vmul.f32 %v398, %v537
    %v540 = vrcp.pop %v516
    %v541 = vmul.f32 %v400, %v540
    %v542 = vmul.f32 %v402, %v540
    %v543 = vrcp.pop %v517
    %v544 = vmul.f32 %v404, %v543
    %v545 = vmul.f32 %v406, %v543
    %v546 = vrcp.pop %v518
    %v547 = vmul.f32 %v408, %v546
    %v548 = vmul.f32 %v410, %v546
    %v549 = vrcp.pop %v519
    %v550 = vmul.f32 %v412, %v549
    %v551 = vmul.f32 %v414, %v549
    %v552 = vrcp.pop %v520
    %v553 = vmul.f32 %v416, %v552
    %v554 = vmul.f32 %v418, %v552
    %v555 = vrcp.pop %v521
    %v556 = vmul.f32 %v420, %v555
    %v557 = vmul.f32 %v422, %v555
    %v558 = vrcp.pop %v522
    %v559 = vmul.f32 %v424, %v558
    %v560 = vmul.f32 %v426, %v558
    %v561 = vrcp.pop %v523
    %v562 = vmul.f32 %v428, %v561
    %v563 = vmul.f32 %v430, %v561
    %v564 = vrcp.pop %v524
    %v565 = vmul.f32 %v432, %v564
    %v566 = vmul.f32 %v434, %v564
    %v567 = vrcp.pop %v525
    %v568 = vmul.f32 %v436, %v567
    %v569 = vmul.f32 %v438, %v567
    %v570 = vrcp.pop %v526
    %v571 = vmul.f32 %v440, %v570
    %v572 = vmul.f32 %v442, %v570
    %v573 = vrcp.pop %v527
    %v574 = vmul.f32 %v444, %v573
    %v575 = vmul.f32 %v446, %v573
    %v576 = vld [vmem:[%s2] sm:$0xff]
    %v577 = vld [vmem:[%s2 + $0x8] sm:$0xff]
    %v578 = vld [vmem:[%s2 + $0x10] sm:$0xff]
    %v579 = vld [vmem:[%s2 + $0x18] sm:$0xff]
    %v580 = vld [vmem:[%s2 + $0x20] sm:$0xff]
    %v581 = vld [vmem:[%s2 + $0x28] sm:$0xff]
    %v582 = vld [vmem:[%s2 + $0x30] sm:$0xff]
    %v583 = vld [vmem:[%s2 + $0x38] sm:$0xff]
    %v584 = vld [vmem:[%s2 + $0x40] sm:$0xff]
    %v585 = vld [vmem:[%s2 + $0x48] sm:$0xff]
    %v586 = vld [vmem:[%s2 + $0x50] sm:$0xff]
    %v587 = vld [vmem:[%s2 + $0x58] sm:$0xff]
    %v588 = vld [vmem:[%s2 + $0x60] sm:$0xff]
    %v589 = vld [vmem:[%s2 + $0x68] sm:$0xff]
    %v590 = vld [vmem:[%s2 + $0x70] sm:$0xff]
    %v591 = vld [vmem:[%s2 + $0x78] sm:$0xff]
    %v592 = vld [vmem:[%s2 + $0x80] sm:$0xff]
    %v593 = vld [vmem:[%s2 + $0x88] sm:$0xff]
    %v594 = vld [vmem:[%s2 + $0x90] sm:$0xff]
    %v595 = vld [vmem:[%s2 + $0x98] sm:$0xff]
    %v596 = vld [vmem:[%s2 + $0xa0] sm:$0xff]
    %v597 = vld [vmem:[%s2 + $0xa8] sm:$0xff]
    %v598 = vld [vmem:[%s2 + $0xb0] sm:$0xff]
    %v599 = vld [vmem:[%s2 + $0xb8] sm:$0xff]
    %v600 = vld [vmem:[%s2 + $0xc0] sm:$0xff]
    %v601 = vld [vmem:[%s2 + $0xc8] sm:$0xff]
    %v602 = vld [vmem:[%s2 + $0xd0] sm:$0xff]
    %v603 = vld [vmem:[%s2 + $0xd8] sm:$0xff]
    %v604 = vld [vmem:[%s2 + $0xe0] sm:$0xff]
    %v605 = vld [vmem:[%s2 + $0xe8] sm:$0xff]
    %v606 = vld [vmem:[%s2 + $0xf0] sm:$0xff]
    %v607 = vld [vmem:[%s2 + $0xf8] sm:$0xff]
    %v608 = vmul.f32 %v529, %v576
    %v609 = vmul.f32 %v530, %v577
    %v610 = vmul.f32 %v532, %v578
    %v611 = vmul.f32 %v533, %v579
    %v612 = vmul.f32 %v535, %v580
    %v613 = vmul.f32 %v536, %v581
    %v614 = vmul.f32 %v538, %v582
    %v615 = vmul.f32 %v539, %v583
    %v616 = vmul.f32 %v541, %v584
    %v617 = vmul.f32 %v542, %v585
    %v618 = vmul.f32 %v544, %v586
    %v619 = vmul.f32 %v545, %v587
    %v620 = vmul.f32 %v547, %v588
    %v621 = vmul.f32 %v548, %v589
    %v622 = vmul.f32 %v550, %v590
    %v623 = vmul.f32 %v551, %v591
    %v624 = vmul.f32 %v553, %v592
    %v625 = vmul.f32 %v554, %v593
    %v626 = vmul.f32 %v556, %v594
    %v627 = vmul.f32 %v557, %v595
    %v628 = vmul.f32 %v559, %v596
    %v629 = vmul.f32 %v560, %v597
    %v630 = vmul.f32 %v562, %v598
    %v631 = vmul.f32 %v563, %v599
    %v632 = vmul.f32 %v565, %v600
    %v633 = vmul.f32 %v566, %v601
    %v634 = vmul.f32 %v568, %v602
    %v635 = vmul.f32 %v569, %v603
    %v636 = vmul.f32 %v571, %v604
    %v637 = vmul.f32 %v572, %v605
    %v638 = vmul.f32 %v574, %v606
    %v639 = vmul.f32 %v575, %v607
    %v640 = vld [vmem:[%s3] sm:$0xff]
    %v641 = vld [vmem:[%s3 + $0x8] sm:$0xff]
    %v642 = vld [vmem:[%s3 + $0x10] sm:$0xff]
    %v643 = vld [vmem:[%s3 + $0x18] sm:$0xff]
    %v644 = vld [vmem:[%s3 + $0x20] sm:$0xff]
    %v645 = vld [vmem:[%s3 + $0x28] sm:$0xff]
    %v646 = vld [vmem:[%s3 + $0x30] sm:$0xff]
    %v647 = vld [vmem:[%s3 + $0x38] sm:$0xff]
    %v648 = vld [vmem:[%s3 + $0x40] sm:$0xff]
    %v649 = vld [vmem:[%s3 + $0x48] sm:$0xff]
    %v650 = vld [vmem:[%s3 + $0x50] sm:$0xff]
    %v651 = vld [vmem:[%s3 + $0x58] sm:$0xff]
    %v652 = vld [vmem:[%s3 + $0x60] sm:$0xff]
    %v653 = vld [vmem:[%s3 + $0x68] sm:$0xff]
    %v654 = vld [vmem:[%s3 + $0x70] sm:$0xff]
    %v655 = vld [vmem:[%s3 + $0x78] sm:$0xff]
    %v656 = vld [vmem:[%s3 + $0x80] sm:$0xff]
    %v657 = vld [vmem:[%s3 + $0x88] sm:$0xff]
    %v658 = vld [vmem:[%s3 + $0x90] sm:$0xff]
    %v659 = vld [vmem:[%s3 + $0x98] sm:$0xff]
    %v660 = vld [vmem:[%s3 + $0xa0] sm:$0xff]
    %v661 = vld [vmem:[%s3 + $0xa8] sm:$0xff]
    %v662 = vld [vmem:[%s3 + $0xb0] sm:$0xff]
    %v663 = vld [vmem:[%s3 + $0xb8] sm:$0xff]
    %v664 = vld [vmem:[%s3 + $0xc0] sm:$0xff]
    %v665 = vld [vmem:[%s3 + $0xc8] sm:$0xff]
    %v666 = vld [vmem:[%s3 + $0xd0] sm:$0xff]
    %v667 = vld [vmem:[%s3 + $0xd8] sm:$0xff]
    %v668 = vld [vmem:[%s3 + $0xe0] sm:$0xff]
    %v669 = vld [vmem:[%s3 + $0xe8] sm:$0xff]
    %v670 = vld [vmem:[%s3 + $0xf0] sm:$0xff]
    %v671 = vld [vmem:[%s3 + $0xf8] sm:$0xff]
    %v672 = vmul.f32 %v529, %v640
    %v673 = vmul.f32 %v530, %v641
    %v674 = vmul.f32 %v532, %v642
    %v675 = vmul.f32 %v533, %v643
    %v676 = vmul.f32 %v535, %v644
    %v677 = vmul.f32 %v536, %v645
    %v678 = vmul.f32 %v538, %v646
    %v679 = vmul.f32 %v539, %v647
    %v680 = vmul.f32 %v541, %v648
    %v681 = vmul.f32 %v542, %v649
    %v682 = vmul.f32 %v544, %v650
    %v683 = vmul.f32 %v545, %v651
    %v684 = vmul.f32 %v547, %v652
    %v685 = vmul.f32 %v548, %v653
    %v686 = vmul.f32 %v550, %v654
    %v687 = vmul.f32 %v551, %v655
    %v688 = vmul.f32 %v553, %v656
    %v689 = vmul.f32 %v554, %v657
    %v690 = vmul.f32 %v556, %v658
    %v691 = vmul.f32 %v557, %v659
    %v692 = vmul.f32 %v559, %v660
    %v693 = vmul.f32 %v560, %v661
    %v694 = vmul.f32 %v562, %v662
    %v695 = vmul.f32 %v563, %v663
    %v696 = vmul.f32 %v565, %v664
    %v697 = vmul.f32 %v566, %v665
    %v698 = vmul.f32 %v568, %v666
    %v699 = vmul.f32 %v569, %v667
    %v700 = vmul.f32 %v571, %v668
    %v701 = vmul.f32 %v572, %v669
    %v702 = vmul.f32 %v574, %v670
    %v703 = vmul.f32 %v575, %v671
    %v704 = vld [vmem:[%s4] sm:$0xff]
    %v705 = vld [vmem:[%s4 + $0x8] sm:$0xff]
    %v706 = vld [vmem:[%s4 + $0x10] sm:$0xff]
    %v707 = vld [vmem:[%s4 + $0x18] sm:$0xff]
    %v708 = vld [vmem:[%s4 + $0x20] sm:$0xff]
    %v709 = vld [vmem:[%s4 + $0x28] sm:$0xff]
    %v710 = vld [vmem:[%s4 + $0x30] sm:$0xff]
    %v711 = vld [vmem:[%s4 + $0x38] sm:$0xff]
    %v712 = vld [vmem:[%s4 + $0x40] sm:$0xff]
    %v713 = vld [vmem:[%s4 + $0x48] sm:$0xff]
    %v714 = vld [vmem:[%s4 + $0x50] sm:$0xff]
    %v715 = vld [vmem:[%s4 + $0x58] sm:$0xff]
    %v716 = vld [vmem:[%s4 + $0x60] sm:$0xff]
    %v717 = vld [vmem:[%s4 + $0x68] sm:$0xff]
    %v718 = vld [vmem:[%s4 + $0x70] sm:$0xff]
    %v719 = vld [vmem:[%s4 + $0x78] sm:$0xff]
    %v720 = vld [vmem:[%s4 + $0x80] sm:$0xff]
    %v721 = vld [vmem:[%s4 + $0x88] sm:$0xff]
    %v722 = vld [vmem:[%s4 + $0x90] sm:$0xff]
    %v723 = vld [vmem:[%s4 + $0x98] sm:$0xff]
    %v724 = vld [vmem:[%s4 + $0xa0] sm:$0xff]
    %v725 = vld [vmem:[%s4 + $0xa8] sm:$0xff]
    %v726 = vld [vmem:[%s4 + $0xb0] sm:$0xff]
    %v727 = vld [vmem:[%s4 + $0xb8] sm:$0xff]
    %v728 = vld [vmem:[%s4 + $0xc0] sm:$0xff]
    %v729 = vld [vmem:[%s4 + $0xc8] sm:$0xff]
    %v730 = vld [vmem:[%s4 + $0xd0] sm:$0xff]
    %v731 = vld [vmem:[%s4 + $0xd8] sm:$0xff]
    %v732 = vld [vmem:[%s4 + $0xe0] sm:$0xff]
    %v733 = vld [vmem:[%s4 + $0xe8] sm:$0xff]
    %v734 = vld [vmem:[%s4 + $0xf0] sm:$0xff]
    %v735 = vld [vmem:[%s4 + $0xf8] sm:$0xff]
    %v736 = vld [vmem:[%s4 + $0x100] sm:$0x1]
    %v737 = vld [vmem:[%s4 + $0x108] sm:$0x1]
    %v738 = vld [vmem:[%s5] sm:$0xff]
    %v739 = vld [vmem:[%s5 + $0x8] sm:$0xff]
    %v740 = vld [vmem:[%s5 + $0x10] sm:$0xff]
    %v741 = vld [vmem:[%s5 + $0x18] sm:$0xff]
    %v742 = vld [vmem:[%s5 + $0x20] sm:$0xff]
    %v743 = vld [vmem:[%s5 + $0x28] sm:$0xff]
    %v744 = vld [vmem:[%s5 + $0x30] sm:$0xff]
    %v745 = vld [vmem:[%s5 + $0x38] sm:$0xff]
    %v746 = vld [vmem:[%s5 + $0x40] sm:$0xff]
    %v747 = vld [vmem:[%s5 + $0x48] sm:$0xff]
    %v748 = vld [vmem:[%s5 + $0x50] sm:$0xff]
    %v749 = vld [vmem:[%s5 + $0x58] sm:$0xff]
    %v750 = vld [vmem:[%s5 + $0x60] sm:$0xff]
    %v751 = vld [vmem:[%s5 + $0x68] sm:$0xff]
    %v752 = vld [vmem:[%s5 + $0x70] sm:$0xff]
    %v753 = vld [vmem:[%s5 + $0x78] sm:$0xff]
    %v754 = vld [vmem:[%s5 + $0x80] sm:$0xff]
    %v755 = vld [vmem:[%s5 + $0x88] sm:$0xff]
    %v756 = vld [vmem:[%s5 + $0x90] sm:$0xff]
    %v757 = vld [vmem:[%s5 + $0x98] sm:$0xff]
    %v758 = vld [vmem:[%s5 + $0xa0] sm:$0xff]
    %v759 = vld [vmem:[%s5 + $0xa8] sm:$0xff]
    %v760 = vld [vmem:[%s5 + $0xb0] sm:$0xff]
    %v761 = vld [vmem:[%s5 + $0xb8] sm:$0xff]
    %v762 = vld [vmem:[%s5 + $0xc0] sm:$0xff]
    %v763 = vld [vmem:[%s5 + $0xc8] sm:$0xff]
    %v764 = vld [vmem:[%s5 + $0xd0] sm:$0xff]
    %v765 = vld [vmem:[%s5 + $0xd8] sm:$0xff]
    %v766 = vld [vmem:[%s5 + $0xe0] sm:$0xff]
    %v767 = vld [vmem:[%s5 + $0xe8] sm:$0xff]
    %v768 = vld [vmem:[%s5 + $0xf0] sm:$0xff]
    %v769 = vld [vmem:[%s5 + $0xf8] sm:$0xff]
    %v770 = vld [vmem:[%s5 + $0x100] sm:$0x1]
    %v771 = vld [vmem:[%s5 + $0x108] sm:$0x1]
    %v773 = vsel %vm447, %v673, 0
    %v776 = vsel %vm447, %v675, 0
    %v779 = vsel %vm447, %v677, 0
    %v782 = vsel %vm447, %v679, 0
    %v785 = vsel %vm447, %v681, 0
    %v788 = vsel %vm447, %v683, 0
    %v791 = vsel %vm447, %v685, 0
    %v794 = vsel %vm447, %v687, 0
    %v797 = vsel %vm447, %v689, 0
    %v800 = vsel %vm447, %v691, 0
    %v803 = vsel %vm447, %v693, 0
    %v806 = vsel %vm447, %v695, 0
    %v809 = vsel %vm447, %v697, 0
    %v812 = vsel %vm447, %v699, 0
    %v815 = vsel %vm447, %v701, 0
    %v818 = vsel %vm447, %v703, 0
    %vm820 = vcmask 1040384
    %v822 = vsel %vm820, %v770, 0
    %v825 = vsel %vm820, %v771, 0
    %827 = vmatprep.subr.mxu0 %v739
    %828 = vmatpush1.msra.mxu0 %v738
    %829 = vmatprep.subr.mxu0 %v741
    %830 = vmatpush1.msra.mxu0 %v740
    %831 = vmatprep.subr.mxu0 %v743
    %832 = vmatpush1.msra.mxu0 %v742
    %833 = vmatprep.subr.mxu0 %v745
    %834 = vmatpush1.msra.mxu0 %v744
    %835 = vmatprep.subr.mxu0 %v747
    %836 = vmatpush1.msra.mxu0 %v746
    %837 = vmatprep.subr.mxu0 %v749
    %838 = vmatpush1.msra.mxu0 %v748
    %839 = vmatprep.subr.mxu0 %v751
    %840 = vmatpush1.msra.mxu0 %v750
    %841 = vmatprep.subr.mxu0 %v753
    %842 = vmatpush1.msra.mxu0 %v752
    %843 = vmatprep.subr.mxu0 %v755
    %844 = vmatpush1.msra.mxu0 %v754
    %845 = vmatprep.subr.mxu0 %v757
    %846 = vmatpush1.msra.mxu0 %v756
    %847 = vmatprep.subr.mxu0 %v759
    %848 = vmatpush1.msra.mxu0 %v758
    %849 = vmatprep.subr.mxu0 %v761
    %850 = vmatpush1.msra.mxu0 %v760
    %851 = vmatprep.subr.mxu0 %v763
    %852 = vmatpush1.msra.mxu0 %v762
    %853 = vmatprep.subr.mxu0 %v765
    %854 = vmatpush1.msra.mxu0 %v764
    %855 = vmatprep.subr.mxu0 %v767
    %856 = vmatpush1.msra.mxu0 %v766
    %857 = vmatprep.subr.mxu0 %v769
    %858 = vmatpush1.msra.mxu0 %v768
    %859 = vmatprep.subr.mxu0 %v825
    %860 = vmatpush1.msra.mxu0 %v822
    %861 = vmatprep.subr.mxu0 0.0
    %862 = vmatpush1.msra.mxu0 0.0
    %863 = vmatprep.subr.mxu0 0.0
    %864 = vmatpush1.msra.mxu0 0.0
    %865 = vmatprep.subr.mxu0 0.0
    %866 = vmatpush1.msra.mxu0 0.0
    %867 = vmatprep.subr.mxu0 0.0
    %868 = vmatpush1.msra.mxu0 0.0
    %869 = vmatprep.subr.mxu0 0.0
    %870 = vmatpush1.msra.mxu0 0.0
    %871 = vmatprep.subr.mxu0 0.0
    %872 = vmatpush1.msra.mxu0 0.0
    %873 = vmatprep.subr.mxu0 0.0
    %874 = vmatpush1.msra.mxu0 0.0
    %875 = vmatprep.subr.mxu0 0.0
    %876 = vmatpush1.msra.mxu0 0.0
    %877 = vmatprep.subr.mxu0 0.0
    %878 = vmatpush1.msra.mxu0 0.0
    %879 = vmatprep.subr.mxu0 0.0
    %880 = vmatpush1.msra.mxu0 0.0
    %881 = vmatprep.subr.mxu0 0.0
    %882 = vmatpush1.msra.mxu0 0.0
    %883 = vmatprep.subr.mxu0 0.0
    %884 = vmatpush1.msra.mxu0 0.0
    %885 = vmatprep.subr.mxu0 0.0
    %886 = vmatpush1.msra.mxu0 0.0
    %887 = vmatprep.subr.mxu0 0.0
    %888 = vmatpush1.msra.mxu0 0.0
    %889 = vmatprep.subr.mxu0 0.0
    %890 = vmatpush1.msra.mxu0 0.0
    %891 = vmatprep.mubr.f32.mxu0 %v773
    %892 = vmatmul.mubr.f32.gmra.mrb[0].mxu0 %v672
    %v893 = vpop.f32.mrb[0].mxu0
    %v894 = vadd.f32 0.0, %v893
    %v895 = vpop.f32.mrb[0].mxu0
    %v896 = vadd.f32 0.0, %v895
    %897 = vmatprep.mubr.f32.mxu0 %v776
    %898 = vmatmul.mubr.f32.gmra.mrb[0].mxu0 %v674
    %v899 = vpop.f32.mrb[0].mxu0
    %v900 = vadd.f32 0.0, %v899
    %v901 = vpop.f32.mrb[0].mxu0
    %v902 = vadd.f32 0.0, %v901
    %903 = vmatprep.mubr.f32.mxu0 %v779
    %904 = vmatmul.mubr.f32.gmra.mrb[0].mxu0 %v676
    %v905 = vpop.f32.mrb[0].mxu0
    %v906 = vadd.f32 0.0, %v905
    %v907 = vpop.f32.mrb[0].mxu0
    %v908 = vadd.f32 0.0, %v907
    %909 = vmatprep.mubr.f32.mxu0 %v782
    %910 = vmatmul.mubr.f32.gmra.mrb[0].mxu0 %v678
    %v911 = vpop.f32.mrb[0].mxu0
    %v912 = vadd.f32 0.0, %v911
    %v913 = vpop.f32.mrb[0].mxu0
    %v914 = vadd.f32 0.0, %v913
    %915 = vmatprep.mubr.f32.mxu0 %v785
    %916 = vmatmul.mubr.f32.gmra.mrb[0].mxu0 %v680
    %v917 = vpop.f32.mrb[0].mxu0
    %v918 = vadd.f32 0.0, %v917
    %v919 = vpop.f32.mrb[0].mxu0
    %v920 = vadd.f32 0.0, %v919
    %921 = vmatprep.mubr.f32.mxu0 %v788
    %922 = vmatmul.mubr.f32.gmra.mrb[0].mxu0 %v682
    %v923 = vpop.f32.mrb[0].mxu0
    %v924 = vadd.f32 0.0, %v923
    %v925 = vpop.f32.mrb[0].mxu0
    %v926 = vadd.f32 0.0, %v925
    %927 = vmatprep.mubr.f32.mxu0 %v791
    %928 = vmatmul.mubr.f32.gmra.mrb[0].mxu0 %v684
    %v929 = vpop.f32.mrb[0].mxu0
    %v930 = vadd.f32 0.0, %v929
    %v931 = vpop.f32.mrb[0].mxu0
    %v932 = vadd.f32 0.0, %v931
    %933 = vmatprep.mubr.f32.mxu0 %v794
    %934 = vmatmul.mubr.f32.gmra.mrb[0].mxu0 %v686
    %v935 = vpop.f32.mrb[0].mxu0
    %v936 = vadd.f32 0.0, %v935
    %v937 = vpop.f32.mrb[0].mxu0
    %v938 = vadd.f32 0.0, %v937
    %939 = vmatprep.mubr.f32.mxu0 %v797
    %940 = vmatmul.mubr.f32.gmra.mrb[0].mxu0 %v688
    %v941 = vpop.f32.mrb[0].mxu0
    %v942 = vadd.f32 0.0, %v941
    %v943 = vpop.f32.mrb[0].mxu0
    %v944 = vadd.f32 0.0, %v943
    %945 = vmatprep.mubr.f32.mxu0 %v800
    %946 = vmatmul.mubr.f32.gmra.mrb[0].mxu0 %v690
    %v947 = vpop.f32.mrb[0].mxu0
    %v948 = vadd.f32 0.0, %v947
    %v949 = vpop.f32.mrb[0].mxu0
    %v950 = vadd.f32 0.0, %v949
    %951 = vmatprep.mubr.f32.mxu0 %v803
    %952 = vmatmul.mubr.f32.gmra.mrb[0].mxu0 %v692
    %v953 = vpop.f32.mrb[0].mxu0
    %v954 = vadd.f32 0.0, %v953
    %v955 = vpop.f32.mrb[0].mxu0
    %v956 = vadd.f32 0.0, %v955
    %957 = vmatprep.mubr.f32.mxu0 %v806
    %958 = vmatmul.mubr.f32.gmra.mrb[0].mxu0 %v694
    %v959 = vpop.f32.mrb[0].mxu0
    %v960 = vadd.f32 0.0, %v959
    %v961 = vpop.f32.mrb[0].mxu0
    %v962 = vadd.f32 0.0, %v961
    %963 = vmatprep.mubr.f32.mxu0 %v809
    %964 = vmatmul.mubr.f32.gmra.mrb[0].mxu0 %v696
    %v965 = vpop.f32.mrb[0].mxu0
    %v966 = vadd.f32 0.0, %v965
    %v967 = vpop.f32.mrb[0].mxu0
    %v968 = vadd.f32 0.0, %v967
    %969 = vmatprep.mubr.f32.mxu0 %v812
    %970 = vmatmul.mubr.f32.gmra.mrb[0].mxu0 %v698
    %v971 = vpop.f32.mrb[0].mxu0
    %v972 = vadd.f32 0.0, %v971
    %v973 = vpop.f32.mrb[0].mxu0
    %v974 = vadd.f32 0.0, %v973
    %975 = vmatprep.mubr.f32.mxu0 %v815
    %976 = vmatmul.mubr.f32.gmra.mrb[0].mxu0 %v700
    %v977 = vpop.f32.mrb[0].mxu0
    %v978 = vadd.f32 0.0, %v977
    %v979 = vpop.f32.mrb[0].mxu0
    %v980 = vadd.f32 0.0, %v979
    %981 = vmatprep.mubr.f32.mxu0 %v818
    %982 = vmatmul.mubr.f32.gmra.mrb[0].mxu0 %v702
    %v983 = vpop.f32.mrb[0].mxu0
    %v984 = vadd.f32 0.0, %v983
    %v985 = vpop.f32.mrb[0].mxu0
    %v986 = vadd.f32 0.0, %v985
    %987 = vdwg.mxu0
    %v989 = vsel %vm447, %v609, 0
    %v992 = vsel %vm447, %v611, 0
    %v995 = vsel %vm447, %v613, 0
    %v998 = vsel %vm447, %v615, 0
    %v1001 = vsel %vm447, %v617, 0
    %v1004 = vsel %vm447, %v619, 0
    %v1007 = vsel %vm447, %v621, 0
    %v1010 = vsel %vm447, %v623, 0
    %v1013 = vsel %vm447, %v625, 0
    %v1016 = vsel %vm447, %v627, 0
    %v1019 = vsel %vm447, %v629, 0
    %v1022 = vsel %vm447, %v631, 0
    %v1025 = vsel %vm447, %v633, 0
    %v1028 = vsel %vm447, %v635, 0
    %v1031 = vsel %vm447, %v637, 0
    %v1034 = vsel %vm447, %v639, 0
    %v1037 = vsel %vm820, %v736, 0
    %v1040 = vsel %vm820, %v737, 0
    %1042 = vmatprep.subr.mxu0 %v705
    %1043 = vmatpush1.msra.mxu0 %v704
    %1044 = vmatprep.subr.mxu0 %v707
    %1045 = vmatpush1.msra.mxu0 %v706
    %1046 = vmatprep.subr.mxu0 %v709
    %1047 = vmatpush1.msra.mxu0 %v708
    %1048 = vmatprep.subr.mxu0 %v711
    %1049 = vmatpush1.msra.mxu0 %v710
    %1050 = vmatprep.subr.mxu0 %v713
    %1051 = vmatpush1.msra.mxu0 %v712
    %1052 = vmatprep.subr.mxu0 %v715
    %1053 = vmatpush1.msra.mxu0 %v714
    %1054 = vmatprep.subr.mxu0 %v717
    %1055 = vmatpush1.msra.mxu0 %v716
    %1056 = vmatprep.subr.mxu0 %v719
    %1057 = vmatpush1.msra.mxu0 %v718
    %1058 = vmatprep.subr.mxu0 %v721
    %1059 = vmatpush1.msra.mxu0 %v720
    %1060 = vmatprep.subr.mxu0 %v723
    %1061 = vmatpush1.msra.mxu0 %v722
    %1062 = vmatprep.subr.mxu0 %v725
    %1063 = vmatpush1.msra.mxu0 %v724
    %1064 = vmatprep.subr.mxu0 %v727
    %1065 = vmatpush1.msra.mxu0 %v726
    %1066 = vmatprep.subr.mxu0 %v729
    %1067 = vmatpush1.msra.mxu0 %v728
    %1068 = vmatprep.subr.mxu0 %v731
    %1069 = vmatpush1.msra.mxu0 %v730
    %1070 = vmatprep.subr.mxu0 %v733
    %1071 = vmatpush1.msra.mxu0 %v732
    %1072 = vmatprep.subr.mxu0 %v735
    %1073 = vmatpush1.msra.mxu0 %v734
    %1074 = vmatprep.subr.mxu0 %v1040
    %1075 = vmatpush1.msra.mxu0 %v1037
    %1076 = vmatprep.subr.mxu0 0.0
    %1077 = vmatpush1.msra.mxu0 0.0
    %1078 = vmatprep.subr.mxu0 0.0
    %1079 = vmatpush1.msra.mxu0 0.0
    %1080 = vmatprep.subr.mxu0 0.0
    %1081 = vmatpush1.msra.mxu0 0.0
    %1082 = vmatprep.subr.mxu0 0.0
    %1083 = vmatpush1.msra.mxu0 0.0
    %1084 = vmatprep.subr.mxu0 0.0
    %1085 = vmatpush1.msra.mxu0 0.0
    %1086 = vmatprep.subr.mxu0 0.0
    %1087 = vmatpush1.msra.mxu0 0.0
    %1088 = vmatprep.subr.mxu0 0.0
    %1089 = vmatpush1.msra.mxu0 0.0
    %1090 = vmatprep.subr.mxu0 0.0
    %1091 = vmatpush1.msra.mxu0 0.0
    %1092 = vmatprep.subr.mxu0 0.0
    %1093 = vmatpush1.msra.mxu0 0.0
    %1094 = vmatprep.subr.mxu0 0.0
    %1095 = vmatpush1.msra.mxu0 0.0
    %1096 = vmatprep.subr.mxu0 0.0
    %1097 = vmatpush1.msra.mxu0 0.0
    %1098 = vmatprep.subr.mxu0 0.0
    %1099 = vmatpush1.msra.mxu0 0.0
    %1100 = vmatprep.subr.mxu0 0.0
    %1101 = vmatpush1.msra.mxu0 0.0
    %1102 = vmatprep.subr.mxu0 0.0
    %1103 = vmatpush1.msra.mxu0 0.0
    %1104 = vmatprep.subr.mxu0 0.0
    %1105 = vmatpush1.msra.mxu0 0.0
    %1106 = vmatprep.mubr.f32.mxu0 %v989
    %1107 = vmatmul.mubr.f32.gmra.mrb[0].mxu0 %v608
    %v1108 = vpop.f32.mrb[0].mxu0
    %v1109 = vadd.f32 %v894, %v1108
    %v1110 = vpop.f32.mrb[0].mxu0
    %v1111 = vadd.f32 %v896, %v1110
    %1112 = vmatprep.mubr.f32.mxu0 %v992
    %1113 = vmatmul.mubr.f32.gmra.mrb[0].mxu0 %v610
    %v1114 = vpop.f32.mrb[0].mxu0
    %v1115 = vadd.f32 %v900, %v1114
    %v1116 = vpop.f32.mrb[0].mxu0
    %v1117 = vadd.f32 %v902, %v1116
    %1118 = vmatprep.mubr.f32.mxu0 %v995
    %1119 = vmatmul.mubr.f32.gmra.mrb[0].mxu0 %v612
    %v1120 = vpop.f32.mrb[0].mxu0
    %v1121 = vadd.f32 %v906, %v1120
    %v1122 = vpop.f32.mrb[0].mxu0
    %v1123 = vadd.f32 %v908, %v1122
    %1124 = vmatprep.mubr.f32.mxu0 %v998
    %1125 = vmatmul.mubr.f32.gmra.mrb[0].mxu0 %v614
    %v1126 = vpop.f32.mrb[0].mxu0
    %v1127 = vadd.f32 %v912, %v1126
    %v1128 = vpop.f32.mrb[0].mxu0
    %v1129 = vadd.f32 %v914, %v1128
    %1130 = vmatprep.mubr.f32.mxu0 %v1001
    %1131 = vmatmul.mubr.f32.gmra.mrb[0].mxu0 %v616
    %v1132 = vpop.f32.mrb[0].mxu0
    %v1133 = vadd.f32 %v918, %v1132
    %v1134 = vpop.f32.mrb[0].mxu0
    %v1135 = vadd.f32 %v920, %v1134
    %1136 = vmatprep.mubr.f32.mxu0 %v1004
    %1137 = vmatmul.mubr.f32.gmra.mrb[0].mxu0 %v618
    %v1138 = vpop.f32.mrb[0].mxu0
    %v1139 = vadd.f32 %v924, %v1138
    %v1140 = vpop.f32.mrb[0].mxu0
    %v1141 = vadd.f32 %v926, %v1140
    %1142 = vmatprep.mubr.f32.mxu0 %v1007
    %1143 = vmatmul.mubr.f32.gmra.mrb[0].mxu0 %v620
    %v1144 = vpop.f32.mrb[0].mxu0
    %v1145 = vadd.f32 %v930, %v1144
    %v1146 = vpop.f32.mrb[0].mxu0
    %v1147 = vadd.f32 %v932, %v1146
    %1148 = vmatprep.mubr.f32.mxu0 %v1010
    %1149 = vmatmul.mubr.f32.gmra.mrb[0].mxu0 %v622
    %v1150 = vpop.f32.mrb[0].mxu0
    %v1151 = vadd.f32 %v936, %v1150
    %v1152 = vpop.f32.mrb[0].mxu0
    %v1153 = vadd.f32 %v938, %v1152
    %1154 = vmatprep.mubr.f32.mxu0 %v1013
    %1155 = vmatmul.mubr.f32.gmra.mrb[0].mxu0 %v624
    %v1156 = vpop.f32.mrb[0].mxu0
    %v1157 = vadd.f32 %v942, %v1156
    %v1158 = vpop.f32.mrb[0].mxu0
    %v1159 = vadd.f32 %v944, %v1158
    %1160 = vmatprep.mubr.f32.mxu0 %v1016
    %1161 = vmatmul.mubr.f32.gmra.mrb[0].mxu0 %v626
    %v1162 = vpop.f32.mrb[0].mxu0
    %v1163 = vadd.f32 %v948, %v1162
    %v1164 = vpop.f32.mrb[0].mxu0
    %v1165 = vadd.f32 %v950, %v1164
    %1166 = vmatprep.mubr.f32.mxu0 %v1019
    %1167 = vmatmul.mubr.f32.gmra.mrb[0].mxu0 %v628
    %v1168 = vpop.f32.mrb[0].mxu0
    %v1169 = vadd.f32 %v954, %v1168
    %v1170 = vpop.f32.mrb[0].mxu0
    %v1171 = vadd.f32 %v956, %v1170
    %1172 = vmatprep.mubr.f32.mxu0 %v1022
    %1173 = vmatmul.mubr.f32.gmra.mrb[0].mxu0 %v630
    %v1174 = vpop.f32.mrb[0].mxu0
    %v1175 = vadd.f32 %v960, %v1174
    %v1176 = vpop.f32.mrb[0].mxu0
    %v1177 = vadd.f32 %v962, %v1176
    %1178 = vmatprep.mubr.f32.mxu0 %v1025
    %1179 = vmatmul.mubr.f32.gmra.mrb[0].mxu0 %v632
    %v1180 = vpop.f32.mrb[0].mxu0
    %v1181 = vadd.f32 %v966, %v1180
    %v1182 = vpop.f32.mrb[0].mxu0
    %v1183 = vadd.f32 %v968, %v1182
    %1184 = vmatprep.mubr.f32.mxu0 %v1028
    %1185 = vmatmul.mubr.f32.gmra.mrb[0].mxu0 %v634
    %v1186 = vpop.f32.mrb[0].mxu0
    %v1187 = vadd.f32 %v972, %v1186
    %v1188 = vpop.f32.mrb[0].mxu0
    %v1189 = vadd.f32 %v974, %v1188
    %1190 = vmatprep.mubr.f32.mxu0 %v1031
    %1191 = vmatmul.mubr.f32.gmra.mrb[0].mxu0 %v636
    %v1192 = vpop.f32.mrb[0].mxu0
    %v1193 = vadd.f32 %v978, %v1192
    %v1194 = vpop.f32.mrb[0].mxu0
    %v1195 = vadd.f32 %v980, %v1194
    %1196 = vmatprep.mubr.f32.mxu0 %v1034
    %1197 = vmatmul.mubr.f32.gmra.mrb[0].mxu0 %v638
    %v1198 = vpop.f32.mrb[0].mxu0
    %v1199 = vadd.f32 %v984, %v1198
    %v1200 = vpop.f32.mrb[0].mxu0
    %v1201 = vadd.f32 %v986, %v1200
    %1202 = vdwg.mxu0
    %1203 = vst [vmem:[#allocation2] sm:$0xff] %v1109
    %1204 = vst [vmem:[#allocation2 + $0x8] sm:$0xff] %v1111
    %1205 = vst [vmem:[#allocation2 + $0x10] sm:$0xff] %v1115
    %1206 = vst [vmem:[#allocation2 + $0x18] sm:$0xff] %v1117
    %1207 = vst [vmem:[#allocation2 + $0x20] sm:$0xff] %v1121
    %1208 = vst [vmem:[#allocation2 + $0x28] sm:$0xff] %v1123
    %1209 = vst [vmem:[#allocation2 + $0x30] sm:$0xff] %v1127
    %1210 = vst [vmem:[#allocation2 + $0x38] sm:$0xff] %v1129
    %1211 = vst [vmem:[#allocation2 + $0x40] sm:$0xff] %v1133
    %1212 = vst [vmem:[#allocation2 + $0x48] sm:$0xff] %v1135
    %1213 = vst [vmem:[#allocation2 + $0x50] sm:$0xff] %v1139
    %1214 = vst [vmem:[#allocation2 + $0x58] sm:$0xff] %v1141
    %1215 = vst [vmem:[#allocation2 + $0x60] sm:$0xff] %v1145
    %1216 = vst [vmem:[#allocation2 + $0x68] sm:$0xff] %v1147
    %1217 = vst [vmem:[#allocation2 + $0x70] sm:$0xff] %v1151
    %1218 = vst [vmem:[#allocation2 + $0x78] sm:$0xff] %v1153
    %1219 = vst [vmem:[#allocation2 + $0x80] sm:$0xff] %v1157
    %1220 = vst [vmem:[#allocation2 + $0x88] sm:$0xff] %v1159
    %1221 = vst [vmem:[#allocation2 + $0x90] sm:$0xff] %v1163
    %1222 = vst [vmem:[#allocation2 + $0x98] sm:$0xff] %v1165
    %1223 = vst [vmem:[#allocation2 + $0xa0] sm:$0xff] %v1169
    %1224 = vst [vmem:[#allocation2 + $0xa8] sm:$0xff] %v1171
    %1225 = vst [vmem:[#allocation2 + $0xb0] sm:$0xff] %v1175
    %1226 = vst [vmem:[#allocation2 + $0xb8] sm:$0xff] %v1177
    %1227 = vst [vmem:[#allocation2 + $0xc0] sm:$0xff] %v1181
    %1228 = vst [vmem:[#allocation2 + $0xc8] sm:$0xff] %v1183
    %1229 = vst [vmem:[#allocation2 + $0xd0] sm:$0xff] %v1187
    %1230 = vst [vmem:[#allocation2 + $0xd8] sm:$0xff] %v1189
    %1231 = vst [vmem:[#allocation2 + $0xe0] sm:$0xff] %v1193
    %1232 = vst [vmem:[#allocation2 + $0xe8] sm:$0xff] %v1195
    %1233 = vst [vmem:[#allocation2 + $0xf0] sm:$0xff] %v1199
    %1234 = vst [vmem:[#allocation2 + $0xf8] sm:$0xff] %v1201
    // Predicated region
    $region26: #{tpu_custom_call.1} parent=1 // pred_check
      _
    $region27: #{tpu_custom_call.1} parent=1 // pred_check_branch
      %1236 = sbr.rel (0) target = $region29
    $region28: #{tpu_custom_call.1} parent=1 // pred_region
      %s1238 = ssub.s32 4096, 4096
      %1239 = vsyncadd [#allocation3], %s1238
      %s1240 = sshll.u32 [#allocation2], 4
      %s1241 = int_to_ptr.vmem [resolvable:$true] %s1240
      %1246 = dma.vmem_to_hbm [thread:$0]  %s1241, 4096, %s6, [#allocation3], 256, 256, 16
    $region29: #{tpu_custom_call.1} parent=1 // pred_fallthru
      _
    // Predicated region
    $region30: #{tpu_custom_call.1} parent=1 // pred_check
      _
    $region31: #{tpu_custom_call.1} parent=1 // pred_check_branch
      %1248 = sbr.rel (0) target = $region33
    $region32: #{tpu_custom_call.1} parent=1 // pred_region
      %1249 = dma.done [#allocation3], 4096
    $region33: #{tpu_custom_call.1} parent=1 // pred_fallthru
      _
    %1250 = vsyncpa [#allocation3], 1

</llo_original>
